<compile_context>
chip_gen: v7x
topology: tpu7x:2x2x1
jax: 0.10.0
libtpu: 0.0.40
codegen_flags: <defaults>
</compile_context>

<pallas_src>
import jax
import jax.numpy as jnp
from jax.experimental import pallas as pl
from jax.experimental.pallas import tpu as pltpu


def _round_up(x, m):
    return (x + m - 1) // m * m


def _relation_head_kernel(reps_ref, mask_ref, w_ref, bias_ref, out_ref):
    """One grid step == one tile of TB batch rows.

    reps_ref : (TB, 2, H) VMEM, backbone dtype -- gathered [ent1, ent2] rows
    mask_ref : (TB, 2)    VMEM f32            -- 1.0 if marker found, else 0.0
    w_ref    : (2, H)     VMEM f32            -- classifier weight [w_ent1; w_ent2]
    bias_ref : (1,)       SMEM f32            -- classifier bias
    out_ref  : (1, TB)    VMEM f32            -- lane-dense logits for this tile
    """
    reps = reps_ref[...].astype(jnp.float32)                       # cast in-kernel
    # dropout: identity in eval mode
    prod = reps * mask_ref[...][:, :, None] * w_ref[...][None, :, :]  # (TB, 2, H) VPU
    s = jnp.sum(prod, axis=2)                                       # (TB, 2)  lane reduce (XLU)
    logit = jnp.sum(s, axis=1)                                      # (TB,)
    out_ref[...] = logit[None, :] + bias_ref[0]                     # one contiguous store


def relation_classifier_head(input_ids, sequence_output, clf_weight, clf_bias,
                             ent1_start_id, ent2_start_id, *, tb=128):
    """Pallas wrapper. Returns logits of shape (B,) float32."""
    B, S, H = sequence_output.shape
    ids = input_ids.astype(jnp.int32)

    def gather_first(token_id):
        match = ids == token_id
        idx = jnp.argmax(match, axis=1)                              # 0 if absent
        found = jnp.any(match, axis=1)                               # per-row flag
        rep = jnp.take_along_axis(sequence_output, idx[:, None, None], axis=1)
        return rep, found                                            # (B,1,H), (B,)

    rep1, f1 = gather_first(ent1_start_id)
    rep2, f2 = gather_first(ent2_start_id)
    gathered = jnp.concatenate([rep1, rep2], axis=1)                 # (B, 2, H), backbone dtype
    mask = jnp.stack([f1, f2], axis=1).astype(jnp.float32)           # (B, 2)

    # Batch tile size: lane-dense output needs TB % 128 == 0, or TB == padded B.
    if B > tb:
        TB = tb                                                      # tb is a multiple of 128
    else:
        TB = _round_up(B, 8)
    B_pad = _round_up(B, TB)
    if B_pad != B:
        gathered = jnp.pad(gathered, ((0, B_pad - B), (0, 0), (0, 0)))
        mask = jnp.pad(mask, ((0, B_pad - B), (0, 0)))

    w = clf_weight.reshape(2, H).astype(jnp.float32)                 # [w_ent1; w_ent2]
    bias = clf_bias.reshape(1).astype(jnp.float32)                   # scalar -> SMEM

    out = pl.pallas_call(
        _relation_head_kernel,
        out_shape=jax.ShapeDtypeStruct((1, B_pad), jnp.float32),
        grid=(B_pad // TB,),
        in_specs=[
            pl.BlockSpec((TB, 2, H), lambda b: (b, 0, 0)),           # gathered reps tile
            pl.BlockSpec((TB, 2), lambda b: (b, 0)),                 # found mask tile
            pl.BlockSpec((2, H), lambda b: (0, 0)),                  # classifier weight (constant)
            pl.BlockSpec(memory_space=pltpu.MemorySpace.SMEM),       # bias scalar
        ],
        out_specs=pl.BlockSpec((1, TB), lambda b: (0, b)),           # lane-dense output
        compiler_params=pltpu.CompilerParams(
            dimension_semantics=("parallel",)),
    )(gathered, mask, w, bias)
    return out[0, :B]


def stub_transformer(input_ids, attention_mask, emb_table):
    """Deterministic stand-in for the transformer backbone (plain JAX glue)."""
    hidden = jnp.take(emb_table, input_ids, axis=0)                  # (B, S, H)
    return hidden * attention_mask[:, :, None].astype(hidden.dtype)


def reference_forward(input_ids, attention_mask, emb_table, clf_weight, clf_bias,
                      ent1_start_id, ent2_start_id):
    """Pure-JAX reference matching the PyTorch forward (eval mode)."""
    seq = stub_transformer(input_ids, attention_mask, emb_table)
    B, S, H = seq.shape
    logits = []
    for i in range(B):
        tokens = input_ids[i]
        reps = seq[i]

        def pick(tid):
            hits = jnp.nonzero(tokens == tid, size=S, fill_value=-1)[0]
            idx = hits[0]
            return jnp.where(idx >= 0, reps[idx], jnp.zeros((H,), reps.dtype))

        combined = jnp.concatenate([pick(ent1_start_id), pick(ent2_start_id)])
        logits.append(combined @ clf_weight[0] + clf_bias[0])
    return jnp.stack(logits)


if __name__ == "__main__":
    B, S, H = 4, 8, 32
    VOCAB = 64
    ENT1_START, ENT1_END, ENT2_START, ENT2_END = 60, 61, 62, 63

    key = jax.random.PRNGKey(0)
    k_emb, k_w, k_b, k_ids = jax.random.split(key, 4)

    # deterministic parameters
    emb_table = jax.random.normal(k_emb, (VOCAB, H), dtype=jnp.float32) * 0.1
    clf_weight = jax.random.normal(k_w, (1, 2 * H), dtype=jnp.float32) * 0.1  # nn.Linear(2H,1).weight
    clf_bias = jax.random.normal(k_b, (1,), dtype=jnp.float32) * 0.1          # nn.Linear(2H,1).bias

    # example inputs exercising all found/not-found combinations
    input_ids = jax.random.randint(k_ids, (B, S), 0, 50, dtype=jnp.int32)
    input_ids = input_ids.at[0, 2].set(ENT1_START).at[0, 5].set(ENT2_START)  # both
    input_ids = input_ids.at[1, 1].set(ENT1_START)                            # ent1 only
    input_ids = input_ids.at[2, 6].set(ENT2_START)                            # ent2 only
    #  row 3: neither marker
    attention_mask = jnp.ones((B, S), dtype=jnp.int32)

    # "transformer" (stubbed) -> last_hidden_state
    sequence_output = stub_transformer(input_ids, attention_mask, emb_table)

    # Pallas kernel forward
    logits = relation_classifier_head(input_ids, sequence_output,
                                      clf_weight, clf_bias,
                                      ENT1_START, ENT2_START)
    logits = jax.block_until_ready(logits)

    # correctness check against pure-JAX reference
    ref = reference_forward(input_ids, attention_mask, emb_table,
                            clf_weight, clf_bias, ENT1_START, ENT2_START)
    assert logits.shape == (B,)
    assert jnp.allclose(logits, ref, atol=1e-5, rtol=1e-5), (logits, ref)

    print("KERNEL_OK")
</pallas_src>

<mosaic_0001>
module attributes {stable_mosaic.version = 11 : i64} {
  func.func @_relation_head_kernel(%arg0: i32, %arg1: memref<8x2x32xf32, #tpu.memory_space<vmem>>, %arg2: memref<8x2xf32, #tpu.memory_space<vmem>>, %arg3: memref<2x32xf32, #tpu.memory_space<vmem>>, %arg4: memref<1xf32, #tpu.memory_space<smem>>, %arg5: memref<1x8xf32, #tpu.memory_space<vmem>>) attributes {dimension_semantics = [#tpu.dimension_semantics<parallel>], iteration_bounds = array<i64: 1>, scalar_prefetch = 0 : i64, scratch_operands = 0 : i64, tpu.core_type = #tpu.core_type<tc>, window_params = [{transform_indices = @transform_0, window_bounds = array<i64: 8, 2, 32>}, {transform_indices = @transform_1, window_bounds = array<i64: 8, 2>}, {pipeline_mode = #tpu.pipeline_mode<synchronous>, transform_indices = @transform_2, window_bounds = array<i64: 2, 32>}, {transform_indices = @transform_3, window_bounds = array<i64: 1>}, {transform_indices = @transform_4, window_bounds = array<i64: 1, 8>}]} {
    %c0 = arith.constant 0 : index
    %c0_0 = arith.constant 0 : index
    %c0_1 = arith.constant 0 : index
    %0 = vector.load %arg1[%c0, %c0_0, %c0_1] : memref<8x2x32xf32, #tpu.memory_space<vmem>>, vector<8x2x32xf32>
    %c0_2 = arith.constant 0 : index
    %c0_3 = arith.constant 0 : index
    %1 = vector.load %arg2[%c0_2, %c0_3] : memref<8x2xf32, #tpu.memory_space<vmem>>, vector<8x2xf32>
    %2 = vector.shape_cast %1 : vector<8x2xf32> to vector<8x2x1xf32>
    %3 = vector.broadcast %2 : vector<8x2x1xf32> to vector<8x2x32xf32>
    %4 = arith.mulf %0, %3 : vector<8x2x32xf32>
    %c0_4 = arith.constant 0 : index
    %c0_5 = arith.constant 0 : index
    %5 = vector.load %arg3[%c0_4, %c0_5] : memref<2x32xf32, #tpu.memory_space<vmem>>, vector<2x32xf32>
    %6 = vector.shape_cast %5 : vector<2x32xf32> to vector<1x2x32xf32>
    %7 = vector.broadcast %6 : vector<1x2x32xf32> to vector<8x2x32xf32>
    %8 = arith.mulf %4, %7 : vector<8x2x32xf32>
    %cst = arith.constant dense<0.000000e+00> : vector<8x2xf32>
    %9 = vector.multi_reduction <add>, %8, %cst [2] : vector<8x2x32xf32> to vector<8x2xf32>
    %cst_6 = arith.constant dense<0.000000e+00> : vector<8xf32>
    %10 = vector.multi_reduction <add>, %9, %cst_6 [1] : vector<8x2xf32> to vector<8xf32>
    %11 = vector.shape_cast %10 : vector<8xf32> to vector<1x8xf32>
    %c0_7 = arith.constant 0 : index
    %12 = memref.load %arg4[%c0_7] : memref<1xf32, #tpu.memory_space<smem>>
    %13 = vector.broadcast %12 : f32 to vector<1x8xf32>
    %14 = arith.addf %11, %13 : vector<1x8xf32>
    %c0_8 = arith.constant 0 : index
    %c0_9 = arith.constant 0 : index
    %15 = vector.load %arg5[%c0_8, %c0_9] : memref<1x8xf32, #tpu.memory_space<vmem>>, vector<1x8xf32>
    tpu.vector_store %arg5[%c0_8, %c0_9], %14 {strides = array<i32>} : memref<1x8xf32, #tpu.memory_space<vmem>>, vector<1x8xf32>,
    return
  }
  func.func @transform_0(%arg0: i32) -> (i32, i32, i32) {
    %c0_i32 = arith.constant 0 : i32
    %c0_i32_0 = arith.constant 0 : i32
    %c0_i32_1 = arith.constant 0 : i32
    return %arg0, %c0_i32, %c0_i32_0 : i32, i32, i32
  }
  func.func @transform_1(%arg0: i32) -> (i32, i32) {
    %c0_i32 = arith.constant 0 : i32
    %c0_i32_0 = arith.constant 0 : i32
    return %arg0, %c0_i32 : i32, i32
  }
  func.func @transform_2(%arg0: i32) -> (i32, i32) {
    %c0_i32 = arith.constant 0 : i32
    %c0_i32_0 = arith.constant 0 : i32
    %c0_i32_1 = arith.constant 0 : i32
    return %c0_i32, %c0_i32_0 : i32, i32
  }
  func.func @transform_3(%arg0: i32) -> i32 {
    %c0_i32 = arith.constant 0 : i32
    %c0_i32_0 = arith.constant 0 : i32
    return %c0_i32 : i32
  }
  func.func @transform_4(%arg0: i32) -> (i32, i32) {
    %c0_i32 = arith.constant 0 : i32
    %c0_i32_0 = arith.constant 0 : i32
    return %c0_i32, %arg0 : i32, i32
  }
}

</mosaic_0001>

<llo_original>
// kernel: tpu_custom_call.1
$region0: #{tpu_custom_call.1}
  #allocation0 [shape = 'u32[]', space=smem, size = 0x4, offset = 0x4, fixed_abs, tag = 'smem constant byte address 0x4 - core index']
  #allocation1 [shape = 'u32[144,128]{1,0:T(1,128)}', space=vmem, size = 0x12000, scoped, tag = 'internal scratch']
  #allocation2 [shape = 'f32[1]{0:T(128)S(6)}', space=smem, size = 0x200, scoped, tag = 'scoped memory for tpu_custom_call.1']
  %s0 = inlined_call_operand.hbm [shape: f32[8,2,32], index: 0, kind: input, shape index: {}]
  %s1 = inlined_call_operand.vmem [shape: f32[8,2], index: 1, kind: input, shape index: {}]
  %s2 = inlined_call_operand.vmem [shape: f32[2,32], index: 2, kind: input, shape index: {}]
  %s3 = inlined_call_operand.<no memory space> [shape: f32[1], index: 3, kind: input, shape index: {}]
  %s4 = inlined_call_operand.hbm [shape: f32[1,8], index: 4, kind: output, shape index: {}]
  %s5 = sld [smem:[#allocation0]]
  $region30: #{tpu_custom_call.1} parent=0
    _
  %s7 = ssub.s32 1, %s5
  %s8 = scalar_select 0, %s7, %s5
  %9 = sst [smem:[#allocation2]] %s3
  $region1: #{tpu_custom_call.1} parent=0
    #allocation3 [shape = 'u8[8192]{0}', space=vmem, size = 0x2000, scoped, tag = 'input window, operand 0, single buffered']
    #allocation4 [shape = 's32[1]{0}', space=sflag, size = 0x4, scoped, tag = 'scoped memory for tpu_custom_call.1']
    #allocation5 [shape = 's32[1]{0}', space=sflag, size = 0x4, scoped, tag = 'scoped memory for tpu_custom_call.1']
    #allocation6 [shape = 'u8[512]{0}', space=vmem, size = 0x400, scoped, tag = 'output window, operand 0, single buffered']
    %10 = vsyncpa [#allocation4], 0
    %11 = vsyncpa [#allocation5], 0
    // Predicated region
    $region2: #{tpu_custom_call.1} parent=1 // pred_check
      _
    $region3: #{tpu_custom_call.1} parent=1 // pred_check_branch
      %13 = sbr.rel (0) target = $region5
    $region4: #{tpu_custom_call.1} parent=1 // pred_region
      %s15 = ssub.s32 256, 256
      %16 = vsyncadd [#allocation4], %s15
      %s17 = sshll.u32 [#allocation3], 4
      %s18 = int_to_ptr.vmem [resolvable:$true] %s17
      %23 = dma.hbm_to_vmem [thread:$0]  %s0, 256, %s18, [#allocation4], 32, 32, 2
    $region5: #{tpu_custom_call.1} parent=1 // pred_fallthru
      _
    // Predicated region
    $region6: #{tpu_custom_call.1} parent=1 // pred_check
      _
    $region7: #{tpu_custom_call.1} parent=1 // pred_check_branch
      %25 = sbr.rel (0) target = $region9
    $region8: #{tpu_custom_call.1} parent=1 // pred_region
      _
    $region9: #{tpu_custom_call.1} parent=1 // pred_fallthru
      _
    // Predicated region
    $region10: #{tpu_custom_call.1} parent=1 // pred_check
      _
    $region11: #{tpu_custom_call.1} parent=1 // pred_check_branch
      %27 = sbr.rel (0) target = $region13
    $region12: #{tpu_custom_call.1} parent=1 // pred_region
      _
    $region13: #{tpu_custom_call.1} parent=1 // pred_fallthru
      _
    // Predicated region
    $region14: #{tpu_custom_call.1} parent=1 // pred_check
      _
    $region15: #{tpu_custom_call.1} parent=1 // pred_check_branch
      %29 = sbr.rel (0) target = $region17
    $region16: #{tpu_custom_call.1} parent=1 // pred_region
      _
    $region17: #{tpu_custom_call.1} parent=1 // pred_fallthru
      _
    // Predicated region
    $region18: #{tpu_custom_call.1} parent=1 // pred_check
      _
    $region19: #{tpu_custom_call.1} parent=1 // pred_check_branch
      %31 = sbr.rel (0) target = $region21
    $region20: #{tpu_custom_call.1} parent=1 // pred_region
      %32 = dma.done [#allocation4], 256
    $region21: #{tpu_custom_call.1} parent=1 // pred_fallthru
      _
    %v33 = vld [vmem:[#allocation3] sm:$0x3]
    %v34 = vld [vmem:[#allocation3 + $0x2] sm:$0x3]
    %v35 = vld [vmem:[#allocation3 + $0x4] sm:$0x3]
    %v36 = vld [vmem:[#allocation3 + $0x6] sm:$0x3]
    %v37 = vld [vmem:[#allocation3 + $0x8] sm:$0x3]
    %v38 = vld [vmem:[#allocation3 + $0xa] sm:$0x3]
    %v39 = vld [vmem:[#allocation3 + $0xc] sm:$0x3]
    %v40 = vld [vmem:[#allocation3 + $0xe] sm:$0x3]
    %v41 = vld [vmem:[%s1] sm:$0xff]
    %v42 = vlaneseq
    %v43 = vshrl.u32 %v42, 7
    %v44 = vsub.s32 0, %v43
    %v45 = vrot.slane %v41, %v44
    %47 = vbcast.lane.b32.xlu0 %v45, 256
    %v48 = vpop.permute.xlu0 %47
    %v49 = vlaneseq
    %v50 = vshrl.u32 %v49, 7
    %v51 = vsub.s32 1, %v50
    %v52 = vrot.slane %v41, %v51
    %54 = vbcast.lane.b32.xlu0 %v52, 256
    %v55 = vpop.permute.xlu0 %54
    %v56 = vlaneseq
    %v57 = vshrl.u32 %v56, 7
    %v58 = vsub.s32 2, %v57
    %v59 = vrot.slane %v41, %v58
    %61 = vbcast.lane.b32.xlu0 %v59, 256
    %v62 = vpop.permute.xlu0 %61
    %v63 = vlaneseq
    %v64 = vshrl.u32 %v63, 7
    %v65 = vsub.s32 3, %v64
    %v66 = vrot.slane %v41, %v65
    %68 = vbcast.lane.b32.xlu0 %v66, 256
    %v69 = vpop.permute.xlu0 %68
    %v70 = vlaneseq
    %v71 = vshrl.u32 %v70, 7
    %v72 = vsub.s32 4, %v71
    %v73 = vrot.slane %v41, %v72
    %75 = vbcast.lane.b32.xlu0 %v73, 256
    %v76 = vpop.permute.xlu0 %75
    %v77 = vlaneseq
    %v78 = vshrl.u32 %v77, 7
    %v79 = vsub.s32 5, %v78
    %v80 = vrot.slane %v41, %v79
    %82 = vbcast.lane.b32.xlu0 %v80, 256
    %v83 = vpop.permute.xlu0 %82
    %v84 = vlaneseq
    %v85 = vshrl.u32 %v84, 7
    %v86 = vsub.s32 6, %v85
    %v87 = vrot.slane %v41, %v86
    %89 = vbcast.lane.b32.xlu0 %v87, 256
    %v90 = vpop.permute.xlu0 %89
    %v91 = vlaneseq
    %v92 = vshrl.u32 %v91, 7
    %v93 = vsub.s32 7, %v92
    %v94 = vrot.slane %v41, %v93
    %96 = vbcast.lane.b32.xlu0 %v94, 256
    %v97 = vpop.permute.xlu0 %96
    %v98 = vmul.f32 %v33, %v48
    %v99 = vmul.f32 %v34, %v55
    %v100 = vmul.f32 %v35, %v62
    %v101 = vmul.f32 %v36, %v69
    %v102 = vmul.f32 %v37, %v76
    %v103 = vmul.f32 %v38, %v83
    %v104 = vmul.f32 %v39, %v90
    %v105 = vmul.f32 %v40, %v97
    %v106 = vld [vmem:[%s2] sm:$0x3]
    %v107 = vmul.f32 %v98, %v106
    %v108 = vmul.f32 %v99, %v106
    %v109 = vmul.f32 %v100, %v106
    %v110 = vmul.f32 %v101, %v106
    %v111 = vmul.f32 %v102, %v106
    %v112 = vmul.f32 %v103, %v106
    %v113 = vmul.f32 %v104, %v106
    %v114 = vmul.f32 %v105, %v106
    %vm115 = vcmask 254976
    %v116 = vsel %vm115, %v107, 0.0
    %117 = vadd.xlane.f32.xlu0 %v116
    %v118 = vpop.xlane.xlu0 %117
    %v119 = vsel %vm115, %v108, 0.0
    %120 = vadd.xlane.f32.xlu0 %v119
    %v121 = vpop.xlane.xlu0 %120
    %v122 = vsel %vm115, %v109, 0.0
    %123 = vadd.xlane.f32.xlu0 %v122
    %v124 = vpop.xlane.xlu0 %123
    %v125 = vsel %vm115, %v110, 0.0
    %126 = vadd.xlane.f32.xlu0 %v125
    %v127 = vpop.xlane.xlu0 %126
    %v128 = vsel %vm115, %v111, 0.0
    %129 = vadd.xlane.f32.xlu0 %v128
    %v130 = vpop.xlane.xlu0 %129
    %v131 = vsel %vm115, %v112, 0.0
    %132 = vadd.xlane.f32.xlu0 %v131
    %v133 = vpop.xlane.xlu0 %132
    %v134 = vsel %vm115, %v113, 0.0
    %135 = vadd.xlane.f32.xlu0 %v134
    %v136 = vpop.xlane.xlu0 %135
    %v137 = vsel %vm115, %v114, 0.0
    %138 = vadd.xlane.f32.xlu0 %v137
    %v139 = vpop.xlane.xlu0 %138
    %v148 = vlaneseq
    %v149 = vand.u32 %v148, 127
    %v150 = vlaneseq
    %v151 = vshrl.u32 %v150, 7
    %v152 = vsub.s32 %v149, %v151
    %v153 = vrot.slane %v118, %v152
    %v154 = vlaneseq
    %v155 = vshrl.u32 %v154, 7
    %v156 = vsub.s32 %v149, %v155
    %v157 = vrot.slane %v121, %v156
    %v158 = vlaneseq
    %v159 = vshrl.u32 %v158, 7
    %v160 = vsub.s32 %v149, %v159
    %v161 = vrot.slane %v124, %v160
    %v162 = vlaneseq
    %v163 = vshrl.u32 %v162, 7
    %v164 = vsub.s32 %v149, %v163
    %v165 = vrot.slane %v127, %v164
    %v166 = vlaneseq
    %v167 = vshrl.u32 %v166, 7
    %v168 = vsub.s32 %v149, %v167
    %v169 = vrot.slane %v130, %v168
    %v170 = vlaneseq
    %v171 = vshrl.u32 %v170, 7
    %v172 = vsub.s32 %v149, %v171
    %v173 = vrot.slane %v133, %v172
    %v174 = vlaneseq
    %v175 = vshrl.u32 %v174, 7
    %v176 = vsub.s32 %v149, %v175
    %v177 = vrot.slane %v136, %v176
    %v178 = vlaneseq
    %v179 = vshrl.u32 %v178, 7
    %v180 = vsub.s32 %v149, %v179
    %v181 = vrot.slane %v139, %v180
    %vm182 = vcmask 1041409
    %v183 = vsel %vm182, %v157, %v153
    %vm184 = vcmask 1042434
    %v185 = vsel %vm184, %v161, %v183
    %vm186 = vcmask 1043459
    %v187 = vsel %vm186, %v165, %v185
    %vm188 = vcmask 1044484
    %v189 = vsel %vm188, %v169, %v187
    %vm190 = vcmask 1045509
    %v191 = vsel %vm190, %v173, %v189
    %vm192 = vcmask 1046534
    %v193 = vsel %vm192, %v177, %v191
    %vm194 = vcmask 1047559
    %v195 = vsel %vm194, %v181, %v193
    %vm197 = vcmask 15360
    %v198 = vsel %vm197, %v195, 0.0
    %199 = vadd.xlane.f32.xlu0 %v198
    %v200 = vpop.xlane.xlu0 %199
    %s201 = sld [smem:[#allocation2]]
    %v202 = vstv %s201
    %v203 = vadd.f32 %v200, %v202
    %v205 = vlaneseq
    %v206 = vshrl.u32 %v205, 7
    %v207 = vsub.s32 %v149, %v206
    %v208 = vrot.slane %v203, %v207
    %vm210 = vcmask 57344
    %211 = vst.msk [vmem:[#allocation6] sm:$0x1] %vm210, %v208
    // Predicated region
    $region22: #{tpu_custom_call.1} parent=1 // pred_check
      _
    $region23: #{tpu_custom_call.1} parent=1 // pred_check_branch
      %213 = sbr.rel (0) target = $region25
    $region24: #{tpu_custom_call.1} parent=1 // pred_region
      %s215 = ssub.s32 16, 16
      %216 = vsyncadd [#allocation5], %s215
      %s218 = sshll.u32 [#allocation6], 4
      %s219 = int_to_ptr.vmem [resolvable:$true] %s218
      %221 = dma.vmem_to_hbm [thread:$0]  %s219, 16, %s4, [#allocation5]
    $region25: #{tpu_custom_call.1} parent=1 // pred_fallthru
      _
    // Predicated region
    $region26: #{tpu_custom_call.1} parent=1 // pred_check
      _
    $region27: #{tpu_custom_call.1} parent=1 // pred_check_branch
      %223 = sbr.rel (0) target = $region29
    $region28: #{tpu_custom_call.1} parent=1 // pred_region
      %224 = dma.done [#allocation5], 16
    $region29: #{tpu_custom_call.1} parent=1 // pred_fallthru
      _
    %225 = vsyncpa [#allocation4], 1
    %226 = vsyncpa [#allocation5], 1

</llo_original>
